<compile_context>
chip_gen: v7x
topology: tpu7x:2x2x1
jax: 0.10.0
libtpu: 0.0.40
codegen_flags: <defaults>
</compile_context>

<pallas_src>
import functools
import math

import jax
import jax.numpy as jnp
import numpy as np
from jax.experimental import pallas as pl
from jax.experimental.pallas import tpu as pltpu


# ------------------------------ tiling helpers -------------------------------

_VMEM_LIMIT = 48 * 1024 * 1024  # < v7x 64 MiB physical, > default scoped limits


def _row_tile(m, max_rows=512):
    """Largest row tile <= max_rows that divides m (multiple of 8), else whole m."""
    if m <= max_rows:
        return m
    hi = max_rows - (max_rows % 8)
    for t in range(hi, 7, -8):
        if m % t == 0:
            return t
    return m


def _cparams(*semantics):
    return pltpu.CompilerParams(dimension_semantics=semantics,
                                vmem_limit_bytes=_VMEM_LIMIT)


# --------------------------------- kernels -----------------------------------

def _fused_linear_kernel(*refs, norm, activation, fuse_residual, eps):
    """[LayerNorm|RMSNorm] -> x @ W + b -> [tanh-GELU] -> [residual + drop-path scale]."""
    idx = 0
    x_ref = refs[idx]; idx += 1
    nw_ref = nb_ref = None
    if norm == "layer":
        nw_ref, nb_ref = refs[idx], refs[idx + 1]; idx += 2
    elif norm == "rms":
        nw_ref = refs[idx]; idx += 1
    w_ref, b_ref = refs[idx], refs[idx + 1]; idx += 2
    res_ref = scale_ref = None
    if fuse_residual:
        res_ref, scale_ref = refs[idx], refs[idx + 1]; idx += 2
    o_ref = refs[idx]

    x = x_ref[...].astype(jnp.float32)
    if norm == "layer":
        mu = jnp.mean(x, axis=-1, keepdims=True)
        xc = x - mu
        var = jnp.mean(xc * xc, axis=-1, keepdims=True)
        x = xc * jax.lax.rsqrt(var + eps)
        x = x * nw_ref[...].astype(jnp.float32) + nb_ref[...].astype(jnp.float32)
    elif norm == "rms":
        inv = jax.lax.rsqrt(jnp.mean(x * x, axis=-1, keepdims=True) + eps)
        x = x * inv * nw_ref[...].astype(jnp.float32)

    acc = jnp.dot(x.astype(w_ref.dtype), w_ref[...],
                  preferred_element_type=jnp.float32)
    acc = acc + b_ref[...].astype(jnp.float32)

    if activation == "gelu":
        # tanh-approximate GELU: uses the EUP (separate VLIW slot); |err| <= ~3e-3.
        acc = 0.5 * acc * (1.0 + jnp.tanh(0.7978845608028654 *
                                          (acc + 0.044715 * acc * acc * acc)))

    if fuse_residual:
        acc = res_ref[...].astype(jnp.float32) + acc * scale_ref[...].astype(jnp.float32)

    o_ref[...] = acc.astype(o_ref.dtype)


def _diff_attn_kernel(q1_ref, k1_ref, v1_ref, q2_ref, k2_ref, lam_ref, o_ref, *, scale):
    """Differential attention for one (batch, head) grid cell."""
    dims = (((1,), (1,)), ((), ()))       # contract the head_dim of q with head_dim of k
    q1 = q1_ref[0, 0] * scale             # fold 1/sqrt(hd) into q (Nq*hd ops, not Nq*Nk)
    q2 = q2_ref[0, 0] * scale
    s1 = jax.lax.dot_general(q1, k1_ref[0, 0], dims, preferred_element_type=jnp.float32)
    s2 = jax.lax.dot_general(q2, k2_ref[0, 0], dims, preferred_element_type=jnp.float32)

    p1 = jnp.exp(s1 - jnp.max(s1, axis=-1, keepdims=True))
    p2 = jnp.exp(s2 - jnp.max(s2, axis=-1, keepdims=True))

    lam = lam_ref[0]                       # (1, 1) f32 per-head lambda_full
    inv1 = pl.reciprocal(jnp.sum(p1, axis=-1, keepdims=True), approx=True)
    inv2 = pl.reciprocal(jnp.sum(p2, axis=-1, keepdims=True), approx=True) * lam

    d = (p1 * inv1 - p2 * inv2).astype(v1_ref.dtype)
    o = jnp.dot(d, v1_ref[0, 0], preferred_element_type=jnp.float32)
    o_ref[0, 0] = o.astype(o_ref.dtype)


# --------------------------------- wrappers -----------------------------------

def fused_linear(x, w, b, *, norm=None, norm_w=None, norm_b=None, norm_eps=1e-5,
                 activation=None, residual=None, res_scale=None):
    """y = [norm](x) @ w + b; optional GELU; optional y = residual + scale*y.

    x: (M, K); w: (K, N); b: (N,); residual: (M, N); res_scale: (M, 1).
    """
    m, k = x.shape
    n = w.shape[1]
    tm = _row_tile(m)

    arrays = [x]
    specs = [pl.BlockSpec((tm, k), lambda i: (i, 0))]
    if norm == "layer":
        arrays += [norm_w.reshape(1, k), norm_b.reshape(1, k)]
        specs += [pl.BlockSpec((1, k), lambda i: (0, 0)),
                  pl.BlockSpec((1, k), lambda i: (0, 0))]
    elif norm == "rms":
        arrays += [norm_w.reshape(1, k)]
        specs += [pl.BlockSpec((1, k), lambda i: (0, 0))]
    arrays += [w, b.reshape(1, n)]
    specs += [pl.BlockSpec((k, n), lambda i: (0, 0)),
              pl.BlockSpec((1, n), lambda i: (0, 0))]
    fuse_residual = residual is not None
    if fuse_residual:
        arrays += [residual, res_scale]
        specs += [pl.BlockSpec((tm, n), lambda i: (i, 0)),
                  pl.BlockSpec((tm, 1), lambda i: (i, 0))]

    kernel = functools.partial(_fused_linear_kernel, norm=norm, activation=activation,
                               fuse_residual=fuse_residual, eps=norm_eps)
    return pl.pallas_call(
        kernel,
        out_shape=jax.ShapeDtypeStruct((m, n), x.dtype),
        grid=(m // tm,),
        in_specs=specs,
        out_specs=pl.BlockSpec((tm, n), lambda i: (i, 0)),
        compiler_params=_cparams("parallel"),
    )(*arrays)


def diff_attention_core(q1, k1, v1, q2, k2, lambda_full, *, scale):
    """q/k/v: (B, H, N, hd). Returns (B, H, Nq, hd). Grid over (B, H)."""
    b, h, nq, hd = q1.shape
    nk = k1.shape[2]
    lam = lambda_full.reshape(h, 1, 1).astype(jnp.float32)

    q_spec = pl.BlockSpec((1, 1, nq, hd), lambda bi, hi: (bi, hi, 0, 0))
    k_spec = pl.BlockSpec((1, 1, nk, hd), lambda bi, hi: (bi, hi, 0, 0))
    lam_spec = pl.BlockSpec((1, 1, 1), lambda bi, hi: (hi, 0, 0))

    return pl.pallas_call(
        functools.partial(_diff_attn_kernel, scale=scale),
        out_shape=jax.ShapeDtypeStruct((b, h, nq, hd), q1.dtype),
        grid=(b, h),
        in_specs=[q_spec, k_spec, k_spec, q_spec, k_spec, lam_spec],
        out_specs=q_spec,
        compiler_params=_cparams("parallel", "parallel"),
    )(q1, k1, v1, q2, k2, lam)


def drop_path_scale(key, batch, drop_prob, *, training=True, scale_by_keep=True):
    """Per-sample keep/scale vector: 0 for dropped samples, 1/keep_prob (or 1) otherwise."""
    if drop_prob == 0.0 or not training:
        return jnp.ones((batch,), jnp.float32)
    keep_prob = 1.0 - drop_prob
    keep = jax.random.bernoulli(key, keep_prob, (batch,))
    scale = 1.0 / keep_prob if (keep_prob > 0.0 and scale_by_keep) else 1.0
    return jnp.where(keep, jnp.float32(scale), jnp.float32(0.0))


# ------------------------------ parameter init --------------------------------

def _uniform_w(key, fan_in, fan_out, dtype):
    bound = 1.0 / math.sqrt(fan_in)
    return jax.random.uniform(key, (fan_in, fan_out), dtype, -bound, bound)


def _uniform_b(key, fan_in, fan_out, dtype):
    bound = 1.0 / math.sqrt(fan_in)
    return jax.random.uniform(key, (fan_out,), dtype, -bound, bound)


def _lambda_full(num_heads, lambda_init, layer_idx, max_layer):
    lam_scale = (layer_idx + 1) / max_layer
    lambda_1 = jnp.ones((num_heads,), jnp.float32)
    lambda_2 = jnp.full((num_heads,), 1.0 - lambda_init * lam_scale, jnp.float32)
    return lambda_1 - lambda_2 + lambda_init


def init_decoder_block_params(key, dim, num_heads, *, mlp_ratio=4.0, qkv_bias=False,
                              lambda_init=0.1, layer_idx=0, max_layer=12,
                              dtype=jnp.float32):
    hidden = int(dim * mlp_ratio)
    keys = jax.random.split(key, 16)
    ki = iter(keys)

    def lin_w(fi, fo):
        return _uniform_w(next(ki), fi, fo, dtype)

    def lin_b(fi, fo, use_bias):
        if use_bias:
            return _uniform_b(next(ki), fi, fo, dtype)
        return jnp.zeros((fo,), dtype)

    ln = lambda: {"w": jnp.ones((dim,), dtype), "b": jnp.zeros((dim,), dtype)}
    lam = _lambda_full(num_heads, lambda_init, layer_idx, max_layer)

    # self-attention: qkv1 and qkv2 merged column-wise -> (dim, 6*dim)
    attn = {
        "qkv_w": jnp.concatenate([lin_w(dim, 3 * dim), lin_w(dim, 3 * dim)], axis=1),
        "qkv_b": jnp.concatenate([lin_b(dim, 3 * dim, qkv_bias),
                                  lin_b(dim, 3 * dim, qkv_bias)], axis=0),
        "proj_w": lin_w(dim, dim), "proj_b": lin_b(dim, dim, True),
        "rms_w": jnp.ones((dim,), dtype), "lambda_full": lam,
    }
    # cross-attention: q1|q2 -> (dim, 2*dim); kv1|kv2 -> (dim, 4*dim)
    cross = {
        "q_w": jnp.concatenate([lin_w(dim, dim), lin_w(dim, dim)], axis=1),
        "q_b": jnp.concatenate([lin_b(dim, dim, qkv_bias),
                                lin_b(dim, dim, qkv_bias)], axis=0),
        "kv_w": jnp.concatenate([lin_w(dim, 2 * dim), lin_w(dim, 2 * dim)], axis=1),
        "kv_b": jnp.concatenate([lin_b(dim, 2 * dim, qkv_bias),
                                 lin_b(dim, 2 * dim, qkv_bias)], axis=0),
        "proj_w": lin_w(dim, dim), "proj_b": lin_b(dim, dim, True),
        "rms_w": jnp.ones((dim,), dtype), "lambda_full": lam,
    }
    mlp = {"fc1_w": lin_w(dim, hidden), "fc1_b": lin_b(dim, hidden, True),
           "fc2_w": lin_w(hidden, dim), "fc2_b": lin_b(hidden, dim, True)}

    return {"norm1": ln(), "norm2": ln(), "norm3": ln(), "norm_y": ln(),
            "attn": attn, "cross": cross, "mlp": mlp}


# ---------------------------------- forward -----------------------------------

def decoder_block_forward(params, x, y, xpos, ypos, *, num_heads,
                          drop_path_prob=0.0, training=False, scale_by_keep=True,
                          rng=None, branch_scales=None):
    del xpos, ypos  # rope is None in this configuration -> positions unused
    B, N, C = x.shape
    Nk = y.shape[1]
    H = num_heads
    hd = C // H
    M = B * N
    scale = hd ** -0.5

    if branch_scales is None:
        if training and drop_path_prob > 0.0:
            if rng is None:
                rng = jax.random.PRNGKey(0)
            keys = jax.random.split(rng, 3)
            branch_scales = jnp.stack(
                [drop_path_scale(keys[i], B, drop_path_prob, training=True,
                                 scale_by_keep=scale_by_keep) for i in range(3)])
        else:
            branch_scales = jnp.ones((3, B), jnp.float32)
    # per-row (B*N, 1) drop-path scale columns, one per residual branch
    row_scales = jnp.broadcast_to(branch_scales[:, :, None].astype(jnp.float32),
                                  (3, B, N)).reshape(3, M, 1)

    x2 = x.reshape(M, C)

    # ---- self DIFF-attention: x = x + drop_path(attn(norm1(x))) ----
    a = params["attn"]
    qkv = fused_linear(x2, a["qkv_w"], a["qkv_b"], norm="layer",
                       norm_w=params["norm1"]["w"], norm_b=params["norm1"]["b"],
                       norm_eps=1e-5)                                  # (M, 6C)
    # TODO(synk): XLA transpose; see header note.
    qkv = qkv.reshape(B, N, 6, H, hd).transpose(2, 0, 3, 1, 4)         # (6,B,H,N,hd)
    o = diff_attention_core(qkv[0], qkv[1], qkv[2], qkv[3], qkv[4],
                            a["lambda_full"], scale=scale)
    o = o.transpose(0, 2, 1, 3).reshape(M, C)
    x2 = fused_linear(o, a["proj_w"], a["proj_b"], norm="rms", norm_w=a["rms_w"],
                      norm_eps=1e-6, residual=x2, res_scale=row_scales[0])

    # ---- DIFF cross-attention: x = x + drop_path(cross(norm2(x), norm_y(y))) ----
    c = params["cross"]
    y2 = y.reshape(B * Nk, C)
    q12 = fused_linear(x2, c["q_w"], c["q_b"], norm="layer",
                       norm_w=params["norm2"]["w"], norm_b=params["norm2"]["b"],
                       norm_eps=1e-5)                                  # (M, 2C)
    kv12 = fused_linear(y2, c["kv_w"], c["kv_b"], norm="layer",
                        norm_w=params["norm_y"]["w"], norm_b=params["norm_y"]["b"],
                        norm_eps=1e-5)                                 # (B*Nk, 4C)
    q12 = q12.reshape(B, N, 2, H, hd).transpose(2, 0, 3, 1, 4)         # (2,B,H,N,hd)
    kv12 = kv12.reshape(B, Nk, 4, H, hd).transpose(2, 0, 3, 1, 4)      # (4,B,H,Nk,hd)
    o = diff_attention_core(q12[0], kv12[0], kv12[1], q12[1], kv12[2],
                            c["lambda_full"], scale=scale)
    o = o.transpose(0, 2, 1, 3).reshape(M, C)
    x2 = fused_linear(o, c["proj_w"], c["proj_b"], norm="rms", norm_w=c["rms_w"],
                      norm_eps=1e-6, residual=x2, res_scale=row_scales[1])

    # ---- MLP: x = x + drop_path(fc2(gelu(fc1(norm3(x))))) ----
    m_p = params["mlp"]
    h_mid = fused_linear(x2, m_p["fc1_w"], m_p["fc1_b"], norm="layer",
                         norm_w=params["norm3"]["w"], norm_b=params["norm3"]["b"],
                         norm_eps=1e-5, activation="gelu")
    x2 = fused_linear(h_mid, m_p["fc2_w"], m_p["fc2_b"],
                      residual=x2, res_scale=row_scales[2])

    return x2.reshape(B, N, C), y


# --------------------------- pure-JAX reference -------------------------------

def _reference_forward(params, x, y, *, num_heads, branch_scales=None):
    B, N, C = x.shape
    H = num_heads
    hd = C // H
    if branch_scales is None:
        branch_scales = jnp.ones((3, B), jnp.float32)
    s = branch_scales[:, :, None, None]

    def ln(t, p, eps=1e-5):
        mu = jnp.mean(t, -1, keepdims=True)
        var = jnp.mean((t - mu) ** 2, -1, keepdims=True)
        return (t - mu) / jnp.sqrt(var + eps) * p["w"] + p["b"]

    def rms(t, w, eps=1e-6):
        return t * jax.lax.rsqrt(jnp.mean(t * t, -1, keepdims=True) + eps) * w

    def core(q1, k1, v1, q2, k2, lam, scale):
        a1 = jax.nn.softmax(jnp.einsum("bhqd,bhkd->bhqk", q1, k1) * scale, axis=-1)
        a2 = jax.nn.softmax(jnp.einsum("bhqd,bhkd->bhqk", q2, k2) * scale, axis=-1)
        d = a1 - lam.reshape(1, -1, 1, 1) * a2
        return jnp.einsum("bhqk,bhkd->bhqd", d, v1)

    def attn(p, t):
        b, n, c = t.shape
        qkv = (t @ p["qkv_w"] + p["qkv_b"]).reshape(b, n, 6, H, hd).transpose(2, 0, 3, 1, 4)
        o = core(qkv[0], qkv[1], qkv[2], qkv[3], qkv[4], p["lambda_full"], hd ** -0.5)
        o = o.transpose(0, 2, 1, 3).reshape(b, n, c)
        return rms(o, p["rms_w"]) @ p["proj_w"] + p["proj_b"]

    def cross(p, q, kk):
        b, nq, c = q.shape
        nk = kk.shape[1]
        q12 = (q @ p["q_w"] + p["q_b"]).reshape(b, nq, 2, H, hd).transpose(2, 0, 3, 1, 4)
        kv12 = (kk @ p["kv_w"] + p["kv_b"]).reshape(b, nk, 4, H, hd).transpose(2, 0, 3, 1, 4)
        o = core(q12[0], kv12[0], kv12[1], q12[1], kv12[2], p["lambda_full"], hd ** -0.5)
        o = o.transpose(0, 2, 1, 3).reshape(b, nq, c)
        return rms(o, p["rms_w"]) @ p["proj_w"] + p["proj_b"]

    def gelu_exact(t):
        return 0.5 * t * (1.0 + jax.scipy.special.erf(t / jnp.sqrt(2.0)))

    def mlp_(p, t):
        return gelu_exact(t @ p["fc1_w"] + p["fc1_b"]) @ p["fc2_w"] + p["fc2_b"]

    x = x + s[0] * attn(params["attn"], ln(x, params["norm1"]))
    y_ = ln(y, params["norm_y"])
    x = x + s[1] * cross(params["cross"], ln(x, params["norm2"]), y_)
    x = x + s[2] * mlp_(params["mlp"], ln(x, params["norm3"]))
    return x, y


# ------------------------------------ main -------------------------------------

if __name__ == "__main__":
    root = jax.random.PRNGKey(0)
    kx, ky, kp, kd = jax.random.split(root, 4)

    B, N, NK, DIM, HEADS = 2, 8, 8, 32, 4
    x = jax.random.normal(kx, (B, N, DIM), jnp.float32)
    y = jax.random.normal(ky, (B, NK, DIM), jnp.float32)
    xpos = jnp.zeros((B, N, 2), jnp.int32)   # unused: rope=None in this config
    ypos = jnp.zeros((B, NK, 2), jnp.int32)

    params = init_decoder_block_params(kp, DIM, HEADS, mlp_ratio=4.0, qkv_bias=False)

    # --- eval-mode forward (drop_path == identity); heavy math fused in Pallas ---
    out_x, out_y = decoder_block_forward(params, x, y, xpos, ypos, num_heads=HEADS,
                                         drop_path_prob=0.1, training=False)
    out_x = jax.block_until_ready(out_x)
    assert out_x.shape == (B, N, DIM) and out_y.shape == (B, NK, DIM)
    assert bool(jnp.all(jnp.isfinite(out_x)))
    assert bool(jnp.allclose(out_y, y))

    with jax.default_matmul_precision("highest"):
        ref_x, _ = _reference_forward(params, x, y, num_heads=HEADS)
    np.testing.assert_allclose(np.asarray(out_x), np.asarray(ref_x),
                               rtol=3e-2, atol=3e-2)

    # --- training-mode stochastic depth with explicit per-branch, per-sample scales ---
    scales = jnp.array([[0.0, 2.0], [1.0, 0.0], [2.0, 1.0]], jnp.float32)
    tr_x, _ = decoder_block_forward(params, x, y, xpos, ypos, num_heads=HEADS,
                                    branch_scales=scales)
    tr_x = jax.block_until_ready(tr_x)
    with jax.default_matmul_precision("highest"):
        tr_ref, _ = _reference_forward(params, x, y, num_heads=HEADS,
                                       branch_scales=scales)
    np.testing.assert_allclose(np.asarray(tr_x), np.asarray(tr_ref),
                               rtol=3e-2, atol=3e-2)

    # --- drop_path_prob=1.0 in training mode must drop every branch -> x unchanged ---
    dp_x, _ = decoder_block_forward(params, x, y, xpos, ypos, num_heads=HEADS,
                                    drop_path_prob=1.0, training=True, rng=kd)
    dp_x = jax.block_until_ready(dp_x)
    np.testing.assert_allclose(np.asarray(dp_x), np.asarray(x), rtol=0.0, atol=1e-6)

    print("KERNEL_OK")
</pallas_src>

<mosaic_0001>
module attributes {stable_mosaic.version = 11 : i64} {
  func.func @_fused_linear_kernel(%arg0: i32, %arg1: memref<16x32xf32, #tpu.memory_space<vmem>>, %arg2: memref<1x32xf32, #tpu.memory_space<vmem>>, %arg3: memref<1x32xf32, #tpu.memory_space<vmem>>, %arg4: memref<32x192xf32, #tpu.memory_space<vmem>>, %arg5: memref<1x192xf32, #tpu.memory_space<vmem>>, %arg6: memref<16x192xf32, #tpu.memory_space<vmem>>) attributes {dimension_semantics = [#tpu.dimension_semantics<parallel>], iteration_bounds = array<i64: 1>, scalar_prefetch = 0 : i64, scratch_operands = 0 : i64, tpu.core_type = #tpu.core_type<tc>, window_params = [{transform_indices = @transform_0, window_bounds = array<i64: 16, 32>}, {pipeline_mode = #tpu.pipeline_mode<synchronous>, transform_indices = @transform_1, window_bounds = array<i64: 1, 32>}, {pipeline_mode = #tpu.pipeline_mode<synchronous>, transform_indices = @transform_2, window_bounds = array<i64: 1, 32>}, {pipeline_mode = #tpu.pipeline_mode<synchronous>, transform_indices = @transform_3, window_bounds = array<i64: 32, 192>}, {pipeline_mode = #tpu.pipeline_mode<synchronous>, transform_indices = @transform_4, window_bounds = array<i64: 1, 192>}, {transform_indices = @transform_5, window_bounds = array<i64: 16, 192>}]} {
    %c0 = arith.constant 0 : index
    %c0_0 = arith.constant 0 : index
    %0 = vector.load %arg1[%c0, %c0_0] : memref<16x32xf32, #tpu.memory_space<vmem>>, vector<16x32xf32>
    %cst = arith.constant dense<0.000000e+00> : vector<16xf32>
    %1 = vector.multi_reduction <add>, %0, %cst [1] : vector<16x32xf32> to vector<16xf32>
    %2 = vector.shape_cast %1 : vector<16xf32> to vector<16x1xf32>
    %cst_1 = arith.constant 3.200000e+01 : f32
    %3 = vector.broadcast %cst_1 : f32 to vector<16x1xf32>
    %4 = arith.divf %2, %3 : vector<16x1xf32>
    %5 = vector.broadcast %4 : vector<16x1xf32> to vector<16x32xf32>
    %6 = arith.subf %0, %5 : vector<16x32xf32>
    %7 = arith.mulf %6, %6 : vector<16x32xf32>
    %cst_2 = arith.constant dense<0.000000e+00> : vector<16xf32>
    %8 = vector.multi_reduction <add>, %7, %cst_2 [1] : vector<16x32xf32> to vector<16xf32>
    %9 = vector.shape_cast %8 : vector<16xf32> to vector<16x1xf32>
    %cst_3 = arith.constant 3.200000e+01 : f32
    %10 = vector.broadcast %cst_3 : f32 to vector<16x1xf32>
    %11 = arith.divf %9, %10 : vector<16x1xf32>
    %cst_4 = arith.constant 9.99999974E-6 : f32
    %12 = vector.broadcast %cst_4 : f32 to vector<16x1xf32>
    %13 = arith.addf %11, %12 : vector<16x1xf32>
    %14 = math.rsqrt %13 : vector<16x1xf32>
    %15 = vector.broadcast %14 : vector<16x1xf32> to vector<16x32xf32>
    %16 = arith.mulf %6, %15 : vector<16x32xf32>
    %c0_5 = arith.constant 0 : index
    %c0_6 = arith.constant 0 : index
    %17 = vector.load %arg2[%c0_5, %c0_6] : memref<1x32xf32, #tpu.memory_space<vmem>>, vector<1x32xf32>
    %18 = vector.broadcast %17 : vector<1x32xf32> to vector<16x32xf32>
    %19 = arith.mulf %16, %18 : vector<16x32xf32>
    %c0_7 = arith.constant 0 : index
    %c0_8 = arith.constant 0 : index
    %20 = vector.load %arg3[%c0_7, %c0_8] : memref<1x32xf32, #tpu.memory_space<vmem>>, vector<1x32xf32>
    %21 = vector.broadcast %20 : vector<1x32xf32> to vector<16x32xf32>
    %22 = arith.addf %19, %21 : vector<16x32xf32>
    %c0_9 = arith.constant 0 : index
    %c0_10 = arith.constant 0 : index
    %23 = vector.load %arg4[%c0_9, %c0_10] : memref<32x192xf32, #tpu.memory_space<vmem>>, vector<32x192xf32>
    %cst_11 = arith.constant dense<0.000000e+00> : vector<16x192xf32>
    %24 = tpu.matmul %22, %23, %cst_11 {dimension_numbers = #tpu.dot_dimension_numbers<[1], [0], [0], [1], [0, 0, 1, 1], [], []>} : vector<16x32xf32>, vector<32x192xf32>, vector<16x192xf32> -> vector<16x192xf32>
    %c0_12 = arith.constant 0 : index
    %c0_13 = arith.constant 0 : index
    %25 = vector.load %arg5[%c0_12, %c0_13] : memref<1x192xf32, #tpu.memory_space<vmem>>, vector<1x192xf32>
    %26 = vector.broadcast %25 : vector<1x192xf32> to vector<16x192xf32>
    %27 = arith.addf %24, %26 : vector<16x192xf32>
    %c0_14 = arith.constant 0 : index
    %c0_15 = arith.constant 0 : index
    %28 = vector.load %arg6[%c0_14, %c0_15] : memref<16x192xf32, #tpu.memory_space<vmem>>, vector<16x192xf32>
    tpu.vector_store %arg6[%c0_14, %c0_15], %27 {strides = array<i32>} : memref<16x192xf32, #tpu.memory_space<vmem>>, vector<16x192xf32>,
    return
  }
  func.func @transform_0(%arg0: i32) -> (i32, i32) {
    %c0_i32 = arith.constant 0 : i32
    %c0_i32_0 = arith.constant 0 : i32
    return %arg0, %c0_i32 : i32, i32
  }
  func.func @transform_1(%arg0: i32) -> (i32, i32) {
    %c0_i32 = arith.constant 0 : i32
    %c0_i32_0 = arith.constant 0 : i32
    %c0_i32_1 = arith.constant 0 : i32
    return %c0_i32, %c0_i32_0 : i32, i32
  }
  func.func @transform_2(%arg0: i32) -> (i32, i32) {
    %c0_i32 = arith.constant 0 : i32
    %c0_i32_0 = arith.constant 0 : i32
    %c0_i32_1 = arith.constant 0 : i32
    return %c0_i32, %c0_i32_0 : i32, i32
  }
  func.func @transform_3(%arg0: i32) -> (i32, i32) {
    %c0_i32 = arith.constant 0 : i32
    %c0_i32_0 = arith.constant 0 : i32
    %c0_i32_1 = arith.constant 0 : i32
    return %c0_i32, %c0_i32_0 : i32, i32
  }
  func.func @transform_4(%arg0: i32) -> (i32, i32) {
    %c0_i32 = arith.constant 0 : i32
    %c0_i32_0 = arith.constant 0 : i32
    %c0_i32_1 = arith.constant 0 : i32
    return %c0_i32, %c0_i32_0 : i32, i32
  }
  func.func @transform_5(%arg0: i32) -> (i32, i32) {
    %c0_i32 = arith.constant 0 : i32
    %c0_i32_0 = arith.constant 0 : i32
    return %arg0, %c0_i32 : i32, i32
  }
}

</mosaic_0001>

<llo_original>
// kernel: tpu_custom_call.1
$region0: #{tpu_custom_call.1}
  #allocation0 [shape = 'u32[]', space=smem, size = 0x4, offset = 0x4, fixed_abs, tag = 'smem constant byte address 0x4 - core index']
  #allocation1 [shape = 'u32[144,128]{1,0:T(1,128)}', space=vmem, size = 0x12000, scoped, tag = 'internal scratch']
  %s0 = inlined_call_operand.hbm [shape: f32[16,32], index: 0, kind: input, shape index: {}]
  %s1 = inlined_call_operand.vmem [shape: f32[1,32], index: 1, kind: input, shape index: {}]
  %s2 = inlined_call_operand.vmem [shape: f32[1,32], index: 2, kind: input, shape index: {}]
  %s3 = inlined_call_operand.hbm [shape: f32[32,192], index: 3, kind: input, shape index: {}]
  %s4 = inlined_call_operand.vmem [shape: f32[1,192], index: 4, kind: input, shape index: {}]
  %s5 = inlined_call_operand.hbm [shape: f32[16,192], index: 5, kind: output, shape index: {}]
  %s6 = sld [smem:[#allocation0]]
  $region38: #{tpu_custom_call.1} parent=0
    _
  %s8 = ssub.s32 1, %s6
  %s9 = scalar_select 0, %s8, %s6
  $region1: #{tpu_custom_call.1} parent=0
    #allocation2 [shape = 'u8[8192]{0}', space=vmem, size = 0x2000, scoped, tag = 'input window, operand 0, single buffered']
    #allocation3 [shape = 's32[1]{0}', space=sflag, size = 0x4, scoped, tag = 'scoped memory for tpu_custom_call.1']
    #allocation4 [shape = 's32[1]{0}', space=sflag, size = 0x4, scoped, tag = 'scoped memory for tpu_custom_call.1']
    #allocation5 [shape = 'u8[32768]{0}', space=vmem, size = 0x8000, scoped, tag = 'input window, operand 3, single buffered']
    #allocation6 [shape = 's32[1]{0}', space=sflag, size = 0x4, scoped, tag = 'scoped memory for tpu_custom_call.1']
    #allocation7 [shape = 'u8[16384]{0}', space=vmem, size = 0x4000, scoped, tag = 'output window, operand 0, single buffered']
    %10 = vsyncpa [#allocation3], 0
    %11 = vsyncpa [#allocation6], 0
    %12 = vsyncpa [#allocation4], 0
    // Predicated region
    $region2: #{tpu_custom_call.1} parent=1 // pred_check
      _
    $region3: #{tpu_custom_call.1} parent=1 // pred_check_branch
      %14 = sbr.rel (0) target = $region5
    $region4: #{tpu_custom_call.1} parent=1 // pred_region
      %s16 = ssub.s32 256, 256
      %17 = vsyncadd [#allocation3], %s16
      %s18 = sshll.u32 [#allocation2], 4
      %s19 = int_to_ptr.vmem [resolvable:$true] %s18
      %24 = dma.hbm_to_vmem [thread:$0]  %s0, 256, %s19, [#allocation3], 128, 128, 8
    $region5: #{tpu_custom_call.1} parent=1 // pred_fallthru
      _
    // Predicated region
    $region6: #{tpu_custom_call.1} parent=1 // pred_check
      _
    $region7: #{tpu_custom_call.1} parent=1 // pred_check_branch
      %26 = sbr.rel (0) target = $region9
    $region8: #{tpu_custom_call.1} parent=1 // pred_region
      _
    $region9: #{tpu_custom_call.1} parent=1 // pred_fallthru
      _
    // Predicated region
    $region10: #{tpu_custom_call.1} parent=1 // pred_check
      _
    $region11: #{tpu_custom_call.1} parent=1 // pred_check_branch
      %28 = sbr.rel (0) target = $region13
    $region12: #{tpu_custom_call.1} parent=1 // pred_region
      _
    $region13: #{tpu_custom_call.1} parent=1 // pred_fallthru
      _
    // Predicated region
    $region14: #{tpu_custom_call.1} parent=1 // pred_check
      _
    $region15: #{tpu_custom_call.1} parent=1 // pred_check_branch
      %30 = sbr.rel (0) target = $region17
    $region16: #{tpu_custom_call.1} parent=1 // pred_region
      %s32 = ssub.s32 1024, 1024
      %33 = vsyncadd [#allocation6], %s32
      %s34 = sshll.u32 [#allocation5], 4
      %s35 = int_to_ptr.vmem [resolvable:$true] %s34
      %40 = dma.hbm_to_vmem [thread:$0]  %s3, 1024, %s35, [#allocation6], 256, 256, 16
    $region17: #{tpu_custom_call.1} parent=1 // pred_fallthru
      _
    // Predicated region
    $region18: #{tpu_custom_call.1} parent=1 // pred_check
      _
    $region19: #{tpu_custom_call.1} parent=1 // pred_check_branch
      %42 = sbr.rel (0) target = $region21
    $region20: #{tpu_custom_call.1} parent=1 // pred_region
      _
    $region21: #{tpu_custom_call.1} parent=1 // pred_fallthru
      _
    // Predicated region
    $region22: #{tpu_custom_call.1} parent=1 // pred_check
      _
    $region23: #{tpu_custom_call.1} parent=1 // pred_check_branch
      %44 = sbr.rel (0) target = $region25
    $region24: #{tpu_custom_call.1} parent=1 // pred_region
      %45 = dma.done [#allocation3], 256
    $region25: #{tpu_custom_call.1} parent=1 // pred_fallthru
      _
    // Predicated region
    $region26: #{tpu_custom_call.1} parent=1 // pred_check
      _
    $region27: #{tpu_custom_call.1} parent=1 // pred_check_branch
      %47 = sbr.rel (0) target = $region29
    $region28: #{tpu_custom_call.1} parent=1 // pred_region
      %48 = dma.done [#allocation6], 1024
    $region29: #{tpu_custom_call.1} parent=1 // pred_fallthru
      _
    %v49 = vld [vmem:[#allocation2] sm:$0xff]
    %v50 = vld [vmem:[#allocation2 + $0x8] sm:$0xff]
    %vm51 = vcmask 261120
    %v52 = vsel %vm51, %v49, 0.0
    %53 = vadd.xlane.f32.xlu0 %v52
    %v54 = vpop.xlane.xlu0 %53
    %v55 = vsel %vm51, %v50, 0.0
    %56 = vadd.xlane.f32.xlu0 %v55
    %v57 = vpop.xlane.xlu0 %56
    %v58 = vrcp.pop 32.0
    %v59 = vmul.f32 %v54, %v58
    %v60 = vmul.f32 %v57, %v58
    %v61 = vsub.f32 %v49, %v59
    %v62 = vsub.f32 %v50, %v60
    %v63 = vmul.f32 %v61, %v61
    %v64 = vmul.f32 %v62, %v62
    %v65 = vsel %vm51, %v63, 0.0
    %66 = vadd.xlane.f32.xlu0 %v65
    %v67 = vpop.xlane.xlu0 %66
    %v68 = vsel %vm51, %v64, 0.0
    %69 = vadd.xlane.f32.xlu0 %v68
    %v70 = vpop.xlane.xlu0 %69
    %v71 = vmul.f32 %v67, %v58
    %v72 = vmul.f32 %v70, %v58
    %v73 = vadd.f32 %v71, 1e-05
    %v74 = vadd.f32 %v72, 1e-05
    %v75 = vrsqrt.pop %v73
    %v76 = vrsqrt.pop %v74
    %v77 = vmul.f32 %v61, %v75
    %v78 = vmul.f32 %v62, %v76
    %v79 = vld [vmem:[%s1] sm:$0x1]
    %v81 = vlaneseq
    %v82 = vshrl.u32 %v81, 7
    %v83 = vsub.s32 0, %v82
    %v84 = vrot.slane %v79, %v83
    %v86 = vmul.f32 %v77, %v84
    %v87 = vmul.f32 %v78, %v84
    %v88 = vld [vmem:[%s2] sm:$0x1]
    %v90 = vlaneseq
    %v91 = vshrl.u32 %v90, 7
    %v92 = vsub.s32 0, %v91
    %v93 = vrot.slane %v88, %v92
    %v95 = vadd.f32 %v86, %v93
    %v96 = vadd.f32 %v87, %v93
    %v97 = vld [vmem:[#allocation5] sm:$0xff]
    %v98 = vld [vmem:[#allocation5 + $0x8] sm:$0xff]
    %v99 = vld [vmem:[#allocation5 + $0x10] sm:$0xff]
    %v100 = vld [vmem:[#allocation5 + $0x18] sm:$0xff]
    %v101 = vld [vmem:[#allocation5 + $0x20] sm:$0xff]
    %v102 = vld [vmem:[#allocation5 + $0x28] sm:$0xff]
    %v103 = vld [vmem:[#allocation5 + $0x30] sm:$0xff]
    %v104 = vld [vmem:[#allocation5 + $0x38] sm:$0xff]
    %v105 = vld [vmem:[%s4] sm:$0x3]
    %v107 = vlaneseq
    %v108 = vshrl.u32 %v107, 7
    %v109 = vsub.s32 0, %v108
    %v110 = vrot.slane %v105, %v109
    %v111 = vlaneseq
    %v112 = vshrl.u32 %v111, 7
    %v113 = vsub.s32 1, %v112
    %v114 = vrot.slane %v105, %v113
    %v118 = vsel %vm51, %v95, 0
    %v121 = vsel %vm51, %v96, 0
    %123 = vmatprep.subr.mxu0 %v98
    %124 = vmatpush1.msra.mxu0 %v97
    %125 = vmatprep.subr.mxu0 %v100
    %126 = vmatpush1.msra.mxu0 %v99
    %127 = vmatprep.subr.mxu0 %v102
    %128 = vmatpush1.msra.mxu0 %v101
    %129 = vmatprep.subr.mxu0 %v104
    %130 = vmatpush1.msra.mxu0 %v103
    %131 = vmatprep.subr.mxu0 0.0
    %132 = vmatpush1.msra.mxu0 0.0
    %133 = vmatprep.subr.mxu0 0.0
    %134 = vmatpush1.msra.mxu0 0.0
    %135 = vmatprep.subr.mxu0 0.0
    %136 = vmatpush1.msra.mxu0 0.0
    %137 = vmatprep.subr.mxu0 0.0
    %138 = vmatpush1.msra.mxu0 0.0
    %139 = vmatprep.subr.mxu0 0.0
    %140 = vmatpush1.msra.mxu0 0.0
    %141 = vmatprep.subr.mxu0 0.0
    %142 = vmatpush1.msra.mxu0 0.0
    %143 = vmatprep.subr.mxu0 0.0
    %144 = vmatpush1.msra.mxu0 0.0
    %145 = vmatprep.subr.mxu0 0.0
    %146 = vmatpush1.msra.mxu0 0.0
    %147 = vmatprep.subr.mxu0 0.0
    %148 = vmatpush1.msra.mxu0 0.0
    %149 = vmatprep.subr.mxu0 0.0
    %150 = vmatpush1.msra.mxu0 0.0
    %151 = vmatprep.subr.mxu0 0.0
    %152 = vmatpush1.msra.mxu0 0.0
    %153 = vmatprep.subr.mxu0 0.0
    %154 = vmatpush1.msra.mxu0 0.0
    %155 = vmatprep.subr.mxu0 0.0
    %156 = vmatpush1.msra.mxu0 0.0
    %157 = vmatprep.subr.mxu0 0.0
    %158 = vmatpush1.msra.mxu0 0.0
    %159 = vmatprep.subr.mxu0 0.0
    %160 = vmatpush1.msra.mxu0 0.0
    %161 = vmatprep.subr.mxu0 0.0
    %162 = vmatpush1.msra.mxu0 0.0
    %163 = vmatprep.subr.mxu0 0.0
    %164 = vmatpush1.msra.mxu0 0.0
    %165 = vmatprep.subr.mxu0 0.0
    %166 = vmatpush1.msra.mxu0 0.0
    %167 = vmatprep.subr.mxu0 0.0
    %168 = vmatpush1.msra.mxu0 0.0
    %169 = vmatprep.subr.mxu0 0.0
    %170 = vmatpush1.msra.mxu0 0.0
    %171 = vmatprep.subr.mxu0 0.0
    %172 = vmatpush1.msra.mxu0 0.0
    %173 = vmatprep.subr.mxu0 0.0
    %174 = vmatpush1.msra.mxu0 0.0
    %175 = vmatprep.subr.mxu0 0.0
    %176 = vmatpush1.msra.mxu0 0.0
    %177 = vmatprep.subr.mxu0 0.0
    %178 = vmatpush1.msra.mxu0 0.0
    %179 = vmatprep.subr.mxu0 0.0
    %180 = vmatpush1.msra.mxu0 0.0
    %181 = vmatprep.subr.mxu0 0.0
    %182 = vmatpush1.msra.mxu0 0.0
    %183 = vmatprep.subr.mxu0 0.0
    %184 = vmatpush1.msra.mxu0 0.0
    %185 = vmatprep.subr.mxu0 0.0
    %186 = vmatpush1.msra.mxu0 0.0
    %187 = vmatprep.mubr.f32.mxu0 0.0
    %188 = vmatmul.mubr.f32.gmra.mrb[0].mxu0 %v118
    %v189 = vpop.f32.mrb[0].mxu0
    %v190 = vadd.f32 %v110, %v189
    %v191 = vpop.f32.mrb[0].mxu0
    %v192 = vadd.f32 %v114, %v191
    %193 = vmatprep.mubr.f32.mxu0 0.0
    %194 = vmatmul.mubr.f32.gmra.mrb[0].mxu0 %v121
    %v195 = vpop.f32.mrb[0].mxu0
    %v196 = vadd.f32 %v110, %v195
    %v197 = vpop.f32.mrb[0].mxu0
    %v198 = vadd.f32 %v114, %v197
    %199 = vdwg.mxu0
    %200 = vst [vmem:[#allocation7] sm:$0xff] %v190
    %vm201 = vcmask 523264
    %202 = vst.msk [vmem:[#allocation7 + $0x8] sm:$0xff] %vm201, %v192
    %203 = vst [vmem:[#allocation7 + $0x10] sm:$0xff] %v196
    %204 = vst.msk [vmem:[#allocation7 + $0x18] sm:$0xff] %vm201, %v198
    // Predicated region
    $region30: #{tpu_custom_call.1} parent=1 // pred_check
      _
    $region31: #{tpu_custom_call.1} parent=1 // pred_check_branch
      %206 = sbr.rel (0) target = $region33
    $region32: #{tpu_custom_call.1} parent=1 // pred_region
      %s208 = ssub.s32 512, 512
      %209 = vsyncadd [#allocation4], %s208
      %s210 = sshll.u32 [#allocation7], 4
      %s211 = int_to_ptr.vmem [resolvable:$true] %s210
      %216 = dma.vmem_to_hbm [thread:$0]  %s211, 512, %s5, [#allocation4], 256, 256, 16
    $region33: #{tpu_custom_call.1} parent=1 // pred_fallthru
      _
    // Predicated region
    $region34: #{tpu_custom_call.1} parent=1 // pred_check
      _
    $region35: #{tpu_custom_call.1} parent=1 // pred_check_branch
      %218 = sbr.rel (0) target = $region37
    $region36: #{tpu_custom_call.1} parent=1 // pred_region
      %219 = dma.done [#allocation4], 512
    $region37: #{tpu_custom_call.1} parent=1 // pred_fallthru
      _
    %220 = vsyncpa [#allocation3], 1
    %221 = vsyncpa [#allocation6], 1
    %222 = vsyncpa [#allocation4], 1

</llo_original>
